<compile_context>
chip_gen: v5e
topology: v5e:2x2
jax: 0.10.0
libtpu: 0.0.40
codegen_flags: <defaults>
</compile_context>

<pallas_src>
import functools
import math
from dataclasses import dataclass
from functools import partial

import jax
import jax.numpy as jnp
from jax import lax
from jax.experimental import pallas as pl
from jax.experimental.pallas import tpu as pltpu


@dataclass
class LlamaConfig:
    vocab_size: int
    context_length: int
    embedding_dim: int
    num_heads: int
    num_layers: int
    hidden_dim: int
    num_kv_groups: int
    rope_base: float
    dtype: jnp.dtype = jnp.bfloat16


# ---------------------------------------------------------------------------
# Helpers: generation-aware tiles + compiler params
# ---------------------------------------------------------------------------

def _tile(dim, target, aligns=(256, 128, 16, 8)):
    """Largest tile <= target that divides `dim` and is a multiple of one of
    `aligns` (tried in order, largest first).  Falls back to the full
    dimension (a full-extent block is always a legal BlockSpec, and is what
    the small test shapes hit)."""
    if dim <= target:
        return dim
    for a in aligns:
        t = (target // a) * a
        while t >= a:
            if dim % t == 0:
                return t
            t -= a
    return dim


@functools.lru_cache(maxsize=None)
def _tpu_generation():
    try:
        kind = jax.devices()[0].device_kind.lower()
    except Exception:
        return "unknown"
    if "v5" in kind:
        return "v5"
    if "v6" in kind:
        return "v6e"
    if "v7" in kind:
        return "v7x"
    return "other"


@functools.lru_cache(maxsize=None)
def _vmem_limit_bytes():
    # v7x has 64 MiB VMEM/TC -> leave headroom for Mosaic internal scratch;
    # v5e/v6e have 128 MiB -> allow a generous scoped budget.
    try:
        cap = int(getattr(pltpu.get_tpu_info(), "vmem_capacity_bytes"))
    except Exception:
        return None
    if cap <= 64 * 1024 * 1024:
        return 40 * 1024 * 1024
    return min(cap * 3 // 4, 96 * 1024 * 1024)


def _mosaic_params(dimension_semantics):
    return pltpu.CompilerParams(
        dimension_semantics=dimension_semantics,
        vmem_limit_bytes=_vmem_limit_bytes(),
    )


def _ffn_tiles():
    # v7x: 64 MiB VMEM -> smaller hidden chunks; v5e/v6e: exploit 128 MiB for
    # bigger row tiles (better weight reuse).
    if _tpu_generation() == "v7x":
        return 256, 256           # tm, th
    return 512, 512


def _attn_tiles(group_size):
    # Keep the flattened (tq*G, tkv) score tile a reasonable size; smaller
    # q tiles on v5 (128-wide MXU, tighter vreg budget).
    g = max(group_size, 1)
    if _tpu_generation() == "v5":
        return max(128, 256 // g), 256      # tq, tkv
    return max(128, 512 // g), 512


# ---------------------------------------------------------------------------
# Tiled matmul (all linear projections, fused QKV, LM head), optional fused
# residual add in the finalize.
# ---------------------------------------------------------------------------

def _matmul_kernel(x_ref, w_ref, o_ref, acc_ref):
    @pl.when(pl.program_id(2) == 0)
    def _():
        acc_ref[...] = jnp.zeros_like(acc_ref)

    acc_ref[...] += jnp.dot(
        x_ref[...], w_ref[...], preferred_element_type=jnp.float32
    )

    @pl.when(pl.program_id(2) == pl.num_programs(2) - 1)
    def _():
        o_ref[...] = acc_ref[...].astype(o_ref.dtype)


def _matmul_res_kernel(x_ref, w_ref, res_ref, o_ref, acc_ref):
    @pl.when(pl.program_id(2) == 0)
    def _():
        acc_ref[...] = jnp.zeros_like(acc_ref)

    acc_ref[...] += jnp.dot(
        x_ref[...], w_ref[...], preferred_element_type=jnp.float32
    )

    @pl.when(pl.program_id(2) == pl.num_programs(2) - 1)
    def _():
        o_ref[...] = (
            acc_ref[...] + res_ref[...].astype(jnp.float32)
        ).astype(o_ref.dtype)


def linear(x, w, *, residual=None, tm=512, tn=512, tk=512):
    """x: [..., K], w: [K, N] -> [..., N]; optionally adds `residual` (same
    shape as the output) in the matmul finalize."""
    lead = x.shape[:-1]
    K = x.shape[-1]
    N = w.shape[-1]
    x2 = x.reshape(-1, K)
    M = x2.shape[0]

    tm = _tile(M, tm)                      # sublane dim: 8/16-multiples ok
    tn = _tile(N, tn, (256, 128))          # lane-dense output tiles
    tk = _tile(K, tk, (256, 128))
    grid = (M // tm, N // tn, K // tk)

    itm = x2.dtype.itemsize
    cost = pl.CostEstimate(
        flops=int(2 * M * N * K),
        transcendentals=0,
        bytes_accessed=int(itm * (M * K + K * N + 2 * M * N)),
    )

    in_specs = [
        pl.BlockSpec((tm, tk), lambda i, j, k: (i, k)),
        pl.BlockSpec((tk, tn), lambda i, j, k: (k, j)),
    ]
    args = [x2, w]
    kernel = _matmul_kernel
    if residual is not None:
        in_specs.append(pl.BlockSpec((tm, tn), lambda i, j, k: (i, j)))
        args.append(residual.reshape(M, N))
        kernel = _matmul_res_kernel

    out = pl.pallas_call(
        kernel,
        out_shape=jax.ShapeDtypeStruct((M, N), x.dtype),
        grid=grid,
        in_specs=in_specs,
        out_specs=pl.BlockSpec((tm, tn), lambda i, j, k: (i, j)),
        scratch_shapes=[pltpu.VMEM((tm, tn), jnp.float32)],
        compiler_params=_mosaic_params(("parallel", "parallel", "arbitrary")),
        cost_estimate=cost,
    )(*args)
    return out.reshape(*lead, N)


# ---------------------------------------------------------------------------
# Row-tiled RMSNorm (fp32 reduction + scale)
# ---------------------------------------------------------------------------

def _rmsnorm_kernel(x_ref, w_ref, o_ref, *, eps):
    x = x_ref[...].astype(jnp.float32)
    ms = jnp.mean(x * x, axis=-1, keepdims=True)
    y = x * lax.rsqrt(ms + eps)
    o_ref[...] = (y * w_ref[...].astype(jnp.float32)).astype(o_ref.dtype)


def rmsnorm(x, w, eps=1e-5, *, tm=512):
    lead = x.shape[:-1]
    D = x.shape[-1]
    x2 = x.reshape(-1, D)
    M = x2.shape[0]
    tm = _tile(M, tm)

    out = pl.pallas_call(
        partial(_rmsnorm_kernel, eps=eps),
        out_shape=jax.ShapeDtypeStruct(x2.shape, x.dtype),
        grid=(M // tm,),
        in_specs=[
            pl.BlockSpec((tm, D), lambda i: (i, 0)),
            pl.BlockSpec((1, D), lambda i: (0, 0)),
        ],
        out_specs=pl.BlockSpec((tm, D), lambda i: (i, 0)),
        compiler_params=_mosaic_params(("parallel",)),
    )(x2, w.reshape(1, D))
    return out.reshape(*lead, D)


# ---------------------------------------------------------------------------
# Fused SwiGLU FFN, tiled over the hidden dimension (the [M, H] intermediate
# never leaves VMEM).  Optional fused residual add in the finalize.
# ---------------------------------------------------------------------------

def _ffn_body(x_ref, wg_ref, wu_ref, wd_ref, acc_ref):
    x = x_ref[...]
    gate = jnp.dot(x, wg_ref[...], preferred_element_type=jnp.float32)
    up = jnp.dot(x, wu_ref[...], preferred_element_type=jnp.float32)
    h = (jax.nn.silu(gate) * up).astype(x.dtype)
    acc_ref[...] += jnp.dot(h, wd_ref[...], preferred_element_type=jnp.float32)


def _ffn_kernel(x_ref, wg_ref, wu_ref, wd_ref, o_ref, acc_ref):
    @pl.when(pl.program_id(1) == 0)
    def _():
        acc_ref[...] = jnp.zeros_like(acc_ref)

    _ffn_body(x_ref, wg_ref, wu_ref, wd_ref, acc_ref)

    @pl.when(pl.program_id(1) == pl.num_programs(1) - 1)
    def _():
        o_ref[...] = acc_ref[...].astype(o_ref.dtype)


def _ffn_res_kernel(x_ref, wg_ref, wu_ref, wd_ref, res_ref, o_ref, acc_ref):
    @pl.when(pl.program_id(1) == 0)
    def _():
        acc_ref[...] = jnp.zeros_like(acc_ref)

    _ffn_body(x_ref, wg_ref, wu_ref, wd_ref, acc_ref)

    @pl.when(pl.program_id(1) == pl.num_programs(1) - 1)
    def _():
        o_ref[...] = (
            acc_ref[...] + res_ref[...].astype(jnp.float32)
        ).astype(o_ref.dtype)


def swiglu_ffn(x, w_gate, w_up, w_down, *, residual=None):
    """SwiGLU: down( silu(x @ gate) * (x @ up) ), streamed over hidden chunks."""
    lead = x.shape[:-1]
    D = x.shape[-1]
    H = w_gate.shape[-1]
    x2 = x.reshape(-1, D)
    M = x2.shape[0]

    tm_t, th_t = _ffn_tiles()
    tm = _tile(M, tm_t)
    th = _tile(H, th_t, (256, 128))
    grid = (M // tm, H // th)

    itm = x2.dtype.itemsize
    cost = pl.CostEstimate(
        flops=int(6 * M * D * H),
        transcendentals=int(M * H),
        bytes_accessed=int(itm * (3 * M * D + 3 * D * H)),
    )

    in_specs = [
        pl.BlockSpec((tm, D), lambda i, h: (i, 0)),   # x resident across H loop
        pl.BlockSpec((D, th), lambda i, h: (0, h)),   # w_gate chunk
        pl.BlockSpec((D, th), lambda i, h: (0, h)),   # w_up chunk
        pl.BlockSpec((th, D), lambda i, h: (h, 0)),   # w_down chunk
    ]
    args = [x2, w_gate, w_up, w_down]
    kernel = _ffn_kernel
    if residual is not None:
        in_specs.append(pl.BlockSpec((tm, D), lambda i, h: (i, 0)))
        args.append(residual.reshape(M, D))
        kernel = _ffn_res_kernel

    out = pl.pallas_call(
        kernel,
        out_shape=jax.ShapeDtypeStruct((M, D), x.dtype),
        grid=grid,
        in_specs=in_specs,
        out_specs=pl.BlockSpec((tm, D), lambda i, h: (i, 0)),
        scratch_shapes=[pltpu.VMEM((tm, D), jnp.float32)],
        compiler_params=_mosaic_params(("parallel", "arbitrary")),
        cost_estimate=cost,
    )(*args)
    return out.reshape(*lead, D)


# ---------------------------------------------------------------------------
# Flash-style causal GQA attention with fused RoPE.
#   q: [B, S, KVH, G, Dh]   (G = query heads per KV head; no transpose needed)
#   k, v: [B, KVH, S, Dh]
#   out: [B, S, KVH, G, Dh] (reshape to [B, S, D] is free)
# ---------------------------------------------------------------------------

def _rope_rows(x, cos, sin):
    """rotate-half RoPE on rows (last dim = head dim)."""
    d = x.shape[-1]
    x1 = x[..., : d // 2]
    x2 = x[..., d // 2:]
    rot = jnp.concatenate([-x2, x1], axis=-1)
    return x * cos + rot * sin


def _flash_attn_kernel(q_ref, k_ref, v_ref, cq_ref, sq_ref, ck_ref, sk_ref,
                       o_ref, m_sc, l_sc, acc_sc, q_sc,
                       *, scale, group, tq, tkv):
    qi = pl.program_id(2)
    kv = pl.program_id(3)
    q_start = qi * tq
    k_start = kv * tkv
    dh = q_ref.shape[-1]

    @pl.when(kv == 0)
    def _():
        m_sc[...] = jnp.full_like(m_sc, -jnp.inf)
        l_sc[...] = jnp.zeros_like(l_sc)
        acc_sc[...] = jnp.zeros_like(acc_sc)
        # RoPE + 1/sqrt(Dh) folded into q once per q tile (broadcast over the
        # G heads of this KV group), cached in VMEM scratch for the kv loop.
        qv = q_ref[0, :, 0].astype(jnp.float32)                 # (tq, G, Dh)
        qv = _rope_rows(qv, cq_ref[...][:, None, :], sq_ref[...][:, None, :])
        q_sc[...] = (qv * scale).reshape(tq * group, dh).astype(q_sc.dtype)

    def tile_body(masked):
        q2 = q_sc[...]                                          # (tq*G, Dh)
        kb = _rope_rows(k_ref[0, 0].astype(jnp.float32),
                        ck_ref[...], sk_ref[...]).astype(k_ref.dtype)
        vb = v_ref[0, 0]

        # q @ k^T without an explicit transpose/relayout
        s = lax.dot_general(
            q2, kb, (((1,), (1,)), ((), ())),
            preferred_element_type=jnp.float32)                 # (tq*G, tkv)

        if masked:  # only diagonal-straddling tiles pay for iota/compare/select
            row = q_start + lax.broadcasted_iota(jnp.int32, s.shape, 0) // group
            col = k_start + lax.broadcasted_iota(jnp.int32, s.shape, 1)
            s = jnp.where(col <= row, s, jnp.float32(-1e30))

        m_prev = m_sc[...]
        m_new = jnp.maximum(m_prev, jnp.max(s, axis=-1, keepdims=True))
        alpha = jnp.exp(m_prev - m_new)
        p = jnp.exp(s - m_new)
        l_sc[...] = alpha * l_sc[...] + jnp.sum(p, axis=-1, keepdims=True)
        acc_sc[...] = alpha * acc_sc[...] + jnp.dot(
            p.astype(vb.dtype), vb, preferred_element_type=jnp.float32)
        m_sc[...] = m_new

    visible = k_start <= q_start + (tq - 1)        # tile has any unmasked cols
    interior = (k_start + (tkv - 1)) <= q_start    # fully below the diagonal

    @pl.when(jnp.logical_and(visible, interior))
    def _():
        tile_body(False)

    @pl.when(jnp.logical_and(visible, jnp.logical_not(interior)))
    def _():
        tile_body(True)

    @pl.when(kv == pl.num_programs(3) - 1)
    def _():
        inv_l = pl.reciprocal(l_sc[...], approx=True)
        out = (acc_sc[...] * inv_l).reshape(tq, group, dh)
        o_ref[0, :, 0] = out.astype(o_ref.dtype)


def gqa_attention(q, k, v, cos, sin):
    """q: [B,S,KVH,G,Dh]; k,v: [B,KVH,S,Dh]; cos/sin: [S,Dh] fp32.
    Returns [B,S,KVH,G,Dh] (causal, RoPE applied inside the kernel)."""
    B, S, KVH, G, Dh = q.shape
    scale = 1.0 / math.sqrt(Dh)
    tq_t, tkv_t = _attn_tiles(G)
    tq = _tile(S, tq_t)
    tkv = _tile(S, tkv_t)
    grid = (B, KVH, S // tq, S // tkv)

    # K/V (and their cos/sin rows) clamp the kv block index to the last tile
    # that is actually computed for this q tile, so the DMA of fully-masked
    # upper-triangular tiles is elided (repeated block index).
    def kv_block(b, g, qi, kv):
        last = (qi * tq + (tq - 1)) // tkv
        return (b, g, jnp.minimum(kv, last), 0)

    def kv_rope_block(b, g, qi, kv):
        last = (qi * tq + (tq - 1)) // tkv
        return (jnp.minimum(kv, last), 0)

    itm = q.dtype.itemsize
    H = KVH * G
    cost = pl.CostEstimate(
        flops=int(2 * B * H * S * S * Dh),          # ~halved by causal skipping
        transcendentals=int(B * H * S * S // 2),
        bytes_accessed=int(itm * (2 * q.size + k.size + v.size)),
    )

    out = pl.pallas_call(
        partial(_flash_attn_kernel, scale=scale, group=G, tq=tq, tkv=tkv),
        out_shape=jax.ShapeDtypeStruct((B, S, KVH, G, Dh), q.dtype),
        grid=grid,
        in_specs=[
            pl.BlockSpec((1, tq, 1, G, Dh), lambda b, g, qi, kv: (b, qi, g, 0, 0)),
            pl.BlockSpec((1, 1, tkv, Dh), kv_block),
            pl.BlockSpec((1, 1, tkv, Dh), kv_block),
            pl.BlockSpec((tq, Dh), lambda b, g, qi, kv: (qi, 0)),   # cos for q
            pl.BlockSpec((tq, Dh), lambda b, g, qi, kv: (qi, 0)),   # sin for q
            pl.BlockSpec((tkv, Dh), kv_rope_block),                 # cos for k
            pl.BlockSpec((tkv, Dh), kv_rope_block),                 # sin for k
        ],
        out_specs=pl.BlockSpec((1, tq, 1, G, Dh),
                               lambda b, g, qi, kv: (b, qi, g, 0, 0)),
        scratch_shapes=[
            pltpu.VMEM((tq * G, 1), jnp.float32),    # running max
            pltpu.VMEM((tq * G, 1), jnp.float32),    # running denom
            pltpu.VMEM((tq * G, Dh), jnp.float32),   # output accumulator
            pltpu.VMEM((tq * G, Dh), q.dtype),       # roped+scaled q cache
        ],
        compiler_params=_mosaic_params(
            ("parallel", "parallel", "parallel", "arbitrary")),
        cost_estimate=cost,
    )(q, k, v, cos, sin, cos, sin)
    return out


# ---------------------------------------------------------------------------
# Parameters (deterministic synthetic init) and forward pass
# ---------------------------------------------------------------------------

def init_params(key, cfg: LlamaConfig):
    D = cfg.embedding_dim
    H = cfg.hidden_dim
    kv_dim = cfg.num_kv_groups * (D // cfg.num_heads)

    def w(key, shape, scale=0.02):
        return (scale * jax.random.normal(key, shape, jnp.float32)).astype(cfg.dtype)

    keys = iter(jax.random.split(key, 4 + 7 * cfg.num_layers))
    params = {
        "embedding": w(next(keys), (cfg.vocab_size, D)),
        "final_norm": jnp.ones((D,), jnp.float32),
        "w_out": w(next(keys), (D, cfg.vocab_size)),
        "layers": [],
    }
    for _ in range(cfg.num_layers):
        wq = w(next(keys), (D, D))
        wk = w(next(keys), (D, kv_dim))
        wv = w(next(keys), (D, kv_dim))
        params["layers"].append({
            "norm1": jnp.ones((D,), jnp.float32),
            # fused QKV weight: one wide matmul reads h from HBM once
            "wqkv": jnp.concatenate([wq, wk, wv], axis=1),
            "wo": w(next(keys), (D, D)),
            "norm2": jnp.ones((D,), jnp.float32),
            "w_gate": w(next(keys), (D, H)),
            "w_up": w(next(keys), (D, H)),
            "w_down": w(next(keys), (H, D)),
        })
    return params


def rope_tables(S, Dh, base):
    inv_freq = 1.0 / (base ** (jnp.arange(0, Dh, 2, dtype=jnp.float32) / Dh))
    pos = jnp.arange(S, dtype=jnp.float32)
    angles = pos[:, None] * inv_freq[None, :]             # (S, Dh/2)
    angles = jnp.concatenate([angles, angles], axis=-1)   # (S, Dh)
    return jnp.cos(angles), jnp.sin(angles)


def llama3_forward(params, token_ids, cfg: LlamaConfig):
    D = cfg.embedding_dim
    H = cfg.num_heads
    KVH = cfg.num_kv_groups
    G = H // KVH
    Dh = D // H
    kv_dim = KVH * Dh
    B, S = token_ids.shape

    # token embedding (gather) — glue
    x = jnp.take(params["embedding"], token_ids, axis=0)   # [B, S, D]
    cos, sin = rope_tables(S, Dh, cfg.rope_base)

    for layer in params["layers"]:
        # --- grouped-query attention block ---
        h = rmsnorm(x, layer["norm1"])
        qkv = linear(h, layer["wqkv"])                      # fused QKV projection
        q = qkv[..., :D].reshape(B, S, KVH, G, Dh)          # no transpose needed
        k = qkv[..., D:D + kv_dim].reshape(B, S, KVH, Dh).transpose(0, 2, 1, 3)
        v = qkv[..., D + kv_dim:].reshape(B, S, KVH, Dh).transpose(0, 2, 1, 3)
        attn = gqa_attention(q, k, v, cos, sin).reshape(B, S, D)
        x = linear(attn, layer["wo"], residual=x)           # residual fused

        # --- SwiGLU feed-forward block ---
        h = rmsnorm(x, layer["norm2"])
        x = swiglu_ffn(h, layer["w_gate"], layer["w_up"], layer["w_down"],
                       residual=x)                          # residual fused

    x = rmsnorm(x, params["final_norm"])
    logits = linear(x, params["w_out"], tn=1024)            # [B, S, vocab]
    return logits


if __name__ == "__main__":
    cfg = LlamaConfig(
        vocab_size=96,
        context_length=16,
        embedding_dim=64,
        num_heads=4,
        num_layers=2,
        hidden_dim=128,
        num_kv_groups=2,
        rope_base=500000.0,
        dtype=jnp.bfloat16,
    )

    key = jax.random.PRNGKey(0)
    k_params, k_tokens = jax.random.split(key)
    params = init_params(k_params, cfg)

    B, S = 2, 8
    token_ids = jax.random.randint(k_tokens, (B, S), 0, cfg.vocab_size, dtype=jnp.int32)

    logits = llama3_forward(params, token_ids, cfg)
    logits = jax.block_until_ready(logits)

    assert logits.shape == (B, S, cfg.vocab_size)
    assert logits.dtype == jnp.bfloat16
    print("KERNEL_OK")
</pallas_src>

<mosaic_0001>
module attributes {stable_mosaic.version = 11 : i64} {
  func.func @_rmsnorm_kernel(%arg0: i32, %arg1: memref<16x64xbf16, #tpu.memory_space<vmem>>, %arg2: memref<1x64xf32, #tpu.memory_space<vmem>>, %arg3: memref<16x64xbf16, #tpu.memory_space<vmem>>) attributes {dimension_semantics = [#tpu.dimension_semantics<parallel>], iteration_bounds = array<i64: 1>, scalar_prefetch = 0 : i64, scratch_operands = 0 : i64, tpu.core_type = #tpu.core_type<tc>, window_params = [{transform_indices = @transform_0, window_bounds = array<i64: 16, 64>}, {pipeline_mode = #tpu.pipeline_mode<synchronous>, transform_indices = @transform_1, window_bounds = array<i64: 1, 64>}, {transform_indices = @transform_2, window_bounds = array<i64: 16, 64>}]} {
    %c0 = arith.constant 0 : index
    %c0_0 = arith.constant 0 : index
    %0 = vector.load %arg1[%c0, %c0_0] : memref<16x64xbf16, #tpu.memory_space<vmem>>, vector<16x64xbf16>
    %1 = arith.extf %0 : vector<16x64xbf16> to vector<16x64xf32>
    %2 = arith.mulf %1, %1 : vector<16x64xf32>
    %cst = arith.constant dense<0.000000e+00> : vector<16xf32>
    %3 = vector.multi_reduction <add>, %2, %cst [1] : vector<16x64xf32> to vector<16xf32>
    %4 = vector.shape_cast %3 : vector<16xf32> to vector<16x1xf32>
    %cst_1 = arith.constant 6.400000e+01 : f32
    %5 = vector.broadcast %cst_1 : f32 to vector<16x1xf32>
    %6 = arith.divf %4, %5 : vector<16x1xf32>
    %cst_2 = arith.constant 9.99999974E-6 : f32
    %7 = vector.broadcast %cst_2 : f32 to vector<16x1xf32>
    %8 = arith.addf %6, %7 : vector<16x1xf32>
    %9 = math.rsqrt %8 : vector<16x1xf32>
    %10 = vector.broadcast %9 : vector<16x1xf32> to vector<16x64xf32>
    %11 = arith.mulf %1, %10 : vector<16x64xf32>
    %c0_3 = arith.constant 0 : index
    %c0_4 = arith.constant 0 : index
    %12 = vector.load %arg2[%c0_3, %c0_4] : memref<1x64xf32, #tpu.memory_space<vmem>>, vector<1x64xf32>
    %13 = vector.broadcast %12 : vector<1x64xf32> to vector<16x64xf32>
    %14 = arith.mulf %11, %13 : vector<16x64xf32>
    %15 = arith.truncf %14 : vector<16x64xf32> to vector<16x64xbf16>
    %c0_5 = arith.constant 0 : index
    %c0_6 = arith.constant 0 : index
    %16 = vector.load %arg3[%c0_5, %c0_6] : memref<16x64xbf16, #tpu.memory_space<vmem>>, vector<16x64xbf16>
    tpu.vector_store %arg3[%c0_5, %c0_6], %15 {strides = array<i32>} : memref<16x64xbf16, #tpu.memory_space<vmem>>, vector<16x64xbf16>,
    return
  }
  func.func @transform_0(%arg0: i32) -> (i32, i32) {
    %c0_i32 = arith.constant 0 : i32
    %c0_i32_0 = arith.constant 0 : i32
    return %arg0, %c0_i32 : i32, i32
  }
  func.func @transform_1(%arg0: i32) -> (i32, i32) {
    %c0_i32 = arith.constant 0 : i32
    %c0_i32_0 = arith.constant 0 : i32
    %c0_i32_1 = arith.constant 0 : i32
    return %c0_i32, %c0_i32_0 : i32, i32
  }
  func.func @transform_2(%arg0: i32) -> (i32, i32) {
    %c0_i32 = arith.constant 0 : i32
    %c0_i32_0 = arith.constant 0 : i32
    return %arg0, %c0_i32 : i32, i32
  }
}

</mosaic_0001>

<llo_original>
// kernel: tpu_custom_call.1
$region0: #{tpu_custom_call.1}
  #allocation0 [shape = 'u32[]', space=smem, size = 0x4, offset = 0x4, fixed_abs, tag = 'smem constant byte address 0x4 - core index']
  #allocation1 [shape = 'u32[72,128]{1,0:T(1,128)}', space=vmem, size = 0x9000, scoped, tag = 'internal scratch']
  %s0 = inlined_call_operand.hbm [shape: bf16[16,64], index: 0, kind: input, shape index: {}]
  %s1 = inlined_call_operand.hbm [shape: f32[1,64], index: 1, kind: input, shape index: {}]
  %s2 = inlined_call_operand.hbm [shape: bf16[16,64], index: 2, kind: output, shape index: {}]
  %s3 = sld [smem:[#allocation0]]
  $region26: #{tpu_custom_call.1} parent=0
    _
  %s5 = ssub.s32 1, %s3
  %s6 = scalar_select 0, %s5, %s3
  $region1: #{tpu_custom_call.1} parent=0
    #allocation2 [shape = 'u8[4096]{0}', space=vmem, size = 0x1000, scoped, tag = 'input window, operand 0, single buffered']
    #allocation3 [shape = 's32[1]{0}', space=sflag, size = 0x4, scoped, tag = 'scoped memory for tpu_custom_call.1']
    #allocation4 [shape = 's32[1]{0}', space=sflag, size = 0x4, scoped, tag = 'scoped memory for tpu_custom_call.1']
    #allocation5 [shape = 'u8[512]{0}', space=vmem, size = 0x400, scoped, tag = 'input window, operand 1, single buffered']
    #allocation6 [shape = 's32[1]{0}', space=sflag, size = 0x4, scoped, tag = 'scoped memory for tpu_custom_call.1']
    #allocation7 [shape = 'u8[4096]{0}', space=vmem, size = 0x1000, scoped, tag = 'output window, operand 0, single buffered']
    %7 = vsyncpa [#allocation3], 0
    %8 = vsyncpa [#allocation6], 0
    %9 = vsyncpa [#allocation4], 0
    // Predicated region
    $region2: #{tpu_custom_call.1} parent=1 // pred_check
      _
    $region3: #{tpu_custom_call.1} parent=1 // pred_check_branch
      %11 = sbr.rel (0) target = $region5
    $region4: #{tpu_custom_call.1} parent=1 // pred_region
      %13 = vsyncadd [#allocation3], 0
      %s14 = sshll.u32 %s0, 4
      %s15 = int_to_ptr.hbm [resolvable:$true] %s14
      %s16 = sshll.u32 [#allocation2], 4
      %s17 = int_to_ptr.vmem [resolvable:$true] %s16
      %22 = dma.hbm_to_vmem [thread:$0]  %s15, 128, %s17, [#allocation3], 64, 64, 4
    $region5: #{tpu_custom_call.1} parent=1 // pred_fallthru
      _
    // Predicated region
    $region6: #{tpu_custom_call.1} parent=1 // pred_check
      _
    $region7: #{tpu_custom_call.1} parent=1 // pred_check_branch
      %24 = sbr.rel (0) target = $region9
    $region8: #{tpu_custom_call.1} parent=1 // pred_region
      %26 = vsyncadd [#allocation6], 0
      %s28 = sshll.u32 %s1, 4
      %s29 = int_to_ptr.hbm [resolvable:$true] %s28
      %s30 = sshll.u32 [#allocation5], 4
      %s31 = int_to_ptr.vmem [resolvable:$true] %s30
      %33 = dma.hbm_to_vmem [thread:$0]  %s29, 16, %s31, [#allocation6]
    $region9: #{tpu_custom_call.1} parent=1 // pred_fallthru
      _
    // Predicated region
    $region10: #{tpu_custom_call.1} parent=1 // pred_check
      _
    $region11: #{tpu_custom_call.1} parent=1 // pred_check_branch
      %35 = sbr.rel (0) target = $region13
    $region12: #{tpu_custom_call.1} parent=1 // pred_region
      %37 = dma.done [#allocation3], 128
    $region13: #{tpu_custom_call.1} parent=1 // pred_fallthru
      _
    // Predicated region
    $region14: #{tpu_custom_call.1} parent=1 // pred_check
      _
    $region15: #{tpu_custom_call.1} parent=1 // pred_check_branch
      %39 = sbr.rel (0) target = $region17
    $region16: #{tpu_custom_call.1} parent=1 // pred_region
      %41 = dma.done [#allocation6], 16
    $region17: #{tpu_custom_call.1} parent=1 // pred_fallthru
      _
    %v42 = vld [vmem:[#allocation2] sm:$0xf]
    %v43 = vld [vmem:[#allocation2 + $0x4] sm:$0xf]
    %v44 = vunpack.c.l.bf16 %v42
    %v45 = vunpack.c.l.bf16 %v43
    %v46 = vmul.f32 %v44, %v44
    %v47 = vmul.f32 %v45, %v45
    %vm48 = vcmask 523264
    %v49 = vsel %vm48, %v46, 0.0
    %50 = vadd.xlane.f32.xlu0 %v49
    %v51 = vpop.xlane.xlu0 %50
    %v52 = vsel %vm48, %v47, 0.0
    %53 = vadd.xlane.f32.xlu0 %v52
    %v54 = vpop.xlane.xlu0 %53
    %v55 = vrcp.pop 64.0
    %v56 = vmul.f32 64.0, %v55
    %v57 = vsub.f32 1.0, %v56
    %v58 = vmul.f32 %v55, %v57
    %v59 = vadd.f32 %v55, %v58
    %vm60 = vweird.f32 %v55
    %v61 = vsel %vm60, %v55, %v59
    %v62 = vmul.f32 %v51, %v61
    %v63 = vmul.f32 %v54, %v61
    %v64 = vadd.f32 %v62, 1e-05
    %v65 = vadd.f32 %v63, 1e-05
    %v66 = vrsqrt.pop %v64
    %v67 = vmul.f32 %v66, %v64
    %v68 = vmul.f32 %v67, %v66
    %v69 = vmul.f32 0.5, %v68
    %v70 = vsub.f32 1.5, %v69
    %v71 = vmul.f32 %v66, %v70
    %vm72 = vweird.f32 %v64
    %vm73 = vweird.f32 %v66
    %vm74 = vmor %vm72, %vm73
    %v75 = vsel %vm74, %v66, %v71
    %v76 = vrsqrt.pop %v65
    %v77 = vmul.f32 %v76, %v65
    %v78 = vmul.f32 %v77, %v76
    %v79 = vmul.f32 0.5, %v78
    %v80 = vsub.f32 1.5, %v79
    %v81 = vmul.f32 %v76, %v80
    %vm82 = vweird.f32 %v65
    %vm83 = vweird.f32 %v76
    %vm84 = vmor %vm82, %vm83
    %v85 = vsel %vm84, %v76, %v81
    %v86 = vmul.f32 %v44, %v75
    %v87 = vmul.f32 %v45, %v85
    %v88 = vld [vmem:[#allocation5] sm:$0x1]
    %v90 = vperm.slane %v88, 0
    %v92 = vmul.f32 %v86, %v90
    %v93 = vmul.f32 %v87, %v90
    %v94 = vpack.c.bf16 %v92, %v92
    %v95 = vpack.c.bf16 %v93, %v93
    %vm96 = vcmask 519168
    %97 = vst.msk [vmem:[#allocation7] sm:$0xf] %vm96, %v94
    %98 = vst.msk [vmem:[#allocation7 + $0x4] sm:$0xf] %vm96, %v95
    // Predicated region
    $region18: #{tpu_custom_call.1} parent=1 // pred_check
      _
    $region19: #{tpu_custom_call.1} parent=1 // pred_check_branch
      %100 = sbr.rel (0) target = $region21
    $region20: #{tpu_custom_call.1} parent=1 // pred_region
      %102 = vsyncadd [#allocation4], 0
      %s103 = sshll.u32 [#allocation7], 4
      %s104 = int_to_ptr.vmem [resolvable:$true] %s103
      %s105 = sshll.u32 %s2, 4
      %s106 = int_to_ptr.hbm [resolvable:$true] %s105
      %111 = dma.vmem_to_hbm [thread:$0]  %s104, 128, %s106, [#allocation4], 64, 64, 4
    $region21: #{tpu_custom_call.1} parent=1 // pred_fallthru
      _
    // Predicated region
    $region22: #{tpu_custom_call.1} parent=1 // pred_check
      _
    $region23: #{tpu_custom_call.1} parent=1 // pred_check_branch
      %113 = sbr.rel (0) target = $region25
    $region24: #{tpu_custom_call.1} parent=1 // pred_region
      %115 = dma.done [#allocation4], 128
    $region25: #{tpu_custom_call.1} parent=1 // pred_fallthru
      _
    %116 = vsyncpa [#allocation3], 1
    %117 = vsyncpa [#allocation6], 1
    %118 = vsyncpa [#allocation4], 1

</llo_original>
